<compile_context>
chip_gen: v7x
topology: tpu7x:2x2x1
jax: 0.10.0
libtpu: 0.0.40
codegen_flags: <defaults>
</compile_context>

<pallas_src>
import jax
import jax.numpy as jnp
from jax.experimental import pallas as pl
from jax.experimental.pallas import tpu as pltpu


def _freqlinear_kernel(x_ref, w_ref, b_ref, o_ref):
    # x_ref: (tile_t, C), w_ref: (C, 2*M), b_ref: (1, 2*M), o_ref: (tile_t, 2*M)
    o_ref[...] = (
        jnp.dot(x_ref[...], w_ref[...], preferred_element_type=jnp.float32)
        + b_ref[...]
    )


def pack_freq_linear_params(weights, bias, modes1):
    """One-time column permutation: interleaved [re0,im0,re1,im1,...] ->
    blocked [re0..re_{M-1}, im0..im_{M-1}].  Do this once per parameter set."""
    M2 = 2 * modes1
    assert weights.shape[1] == M2 and bias.shape == (1, M2)
    perm = jnp.concatenate(
        [jnp.arange(0, M2, 2, dtype=jnp.int32),   # real columns
         jnp.arange(1, M2, 2, dtype=jnp.int32)]   # imag columns
    )
    return weights[:, perm], bias[:, perm]


def _round_up(v, m):
    return -(-v // m) * m


def _round_down(v, m):
    return (v // m) * m


# Conservative VMEM budget for the double-buffered x and output blocks.
# 12 MiB fits comfortably inside v7x's 32 MiB scoped default (64 MiB physical)
# and leaves headroom for W/bias and compiler scratch on all generations.
_VMEM_BLOCK_BUDGET_BYTES = 12 * 1024 * 1024
# Above this T, split into >=2 grid steps so both v7x TensorCores get tiles.
_LARGE_T_SPLIT = 4096
# Below this many "flops units" (T*C*M2), skip the Pallas launch entirely.
_TINY_PROBLEM_THRESHOLD = 1_000_000


def _choose_tile_t(T, C, M2, max_tile_t=None):
    # Bytes per output row of work kept live in VMEM: double-buffered x row
    # (C f32) + double-buffered output row (M2 f32).
    bytes_per_row = 2 * 4 * (C + M2)
    budget_rows = max(8, _round_down(_VMEM_BLOCK_BUDGET_BYTES // bytes_per_row, 8))
    if max_tile_t is not None:
        budget_rows = min(budget_rows, max(8, _round_down(max_tile_t, 8)))
    if T <= budget_rows:
        if T >= _LARGE_T_SPLIT:
            # Keep >=2 grid steps so the "parallel" axis can shard across
            # v7x's two TensorCores instead of one mega-tile on one core.
            return min(_round_up(pl.cdiv(T, 2), 8), T)
        # Single full block (block dim == array dim is always legal).
        return T
    return budget_rows


def freq_linear(x, w_blocked, b_blocked, modes1, *,
                max_tile_t=None, force_pallas=False):
    """x: (T, C) f32; w_blocked/b_blocked: output of pack_freq_linear_params.
    Returns complex64 (T, modes1), identical to the PyTorch module's forward."""
    T, C = x.shape
    M2 = w_blocked.shape[1]
    assert M2 == 2 * modes1 and b_blocked.shape == (1, M2)

    if (not force_pallas) and (T * C * M2 < _TINY_PROBLEM_THRESHOLD):
        # Tiny problem: a standalone Pallas launch + HBM->VMEM DMA costs more
        # than the matmul itself; let XLA fuse it with neighboring ops.
        h = jnp.dot(x, w_blocked, preferred_element_type=jnp.float32) + b_blocked
    else:
        tile_t = _choose_tile_t(T, C, M2, max_tile_t)
        grid = (pl.cdiv(T, tile_t),)

        cost = pl.CostEstimate(
            flops=2 * T * C * M2,
            transcendentals=0,
            bytes_accessed=4 * (T * C + C * M2 + M2 + T * M2),
        )

        h = pl.pallas_call(
            _freqlinear_kernel,
            out_shape=jax.ShapeDtypeStruct((T, M2), jnp.float32),
            grid=grid,
            in_specs=[
                # x: tiled over T (partial last block handled by Pallas masking)
                pl.BlockSpec((tile_t, C), lambda i: (i, 0)),
                # W, bias: same block every grid step -> stay resident in VMEM
                pl.BlockSpec((C, M2), lambda i: (0, 0)),
                pl.BlockSpec((1, M2), lambda i: (0, 0)),
            ],
            out_specs=pl.BlockSpec((tile_t, M2), lambda i: (i, 0)),
            compiler_params=pltpu.CompilerParams(
                # Independent row tiles -> shard across TensorCores on v7x.
                dimension_semantics=("parallel",),
                vmem_limit_bytes=32 * 1024 * 1024,
            ),
            cost_estimate=cost,
        )(x, w_blocked, b_blocked)

    # Blocked layout: first modes1 columns are real parts, last modes1 are imag.
    # Contiguous slices — no lane deinterleave.
    # TODO(synk): in the full FNO1D pipeline keep h in blocked f32 layout and
    # fuse this into the consumer kernel to avoid a second pass over the output.
    return jax.lax.complex(h[:, :modes1], h[:, modes1:])


if __name__ == "__main__":
    in_channel = 32
    modes1 = 16

    key = jax.random.PRNGKey(0)
    kx1, kx2, kw = jax.random.split(key, 3)

    # Deterministic parameter init mirroring __init__ (interleaved layout,
    # exactly as the PyTorch parameter is stored).
    scale = 1.0 / (in_channel + 2 * modes1)
    weights = scale * jax.random.normal(
        kw, (in_channel, 2 * modes1), dtype=jnp.float32)
    bias = jnp.zeros((1, 2 * modes1), dtype=jnp.float32)

    # One-time layout transform of the parameters.
    w_blocked, b_blocked = pack_freq_linear_params(weights, bias, modes1)

    def reference(xv):
        # Plain-JAX reference with the ORIGINAL interleaved weights
        # (torch.view_as_complex semantics).
        h_ref = xv @ weights + bias
        h_ref = h_ref.reshape(xv.shape[0], modes1, 2)
        return jax.lax.complex(h_ref[..., 0], h_ref[..., 1])

    # --- Case 1: tiny T (module-sized demo): fallback path AND forced-kernel path.
    T_small = 8
    x_small = jax.random.normal(kx1, (T_small, in_channel), dtype=jnp.float32)
    out_small = jax.block_until_ready(
        freq_linear(x_small, w_blocked, b_blocked, modes1))
    out_small_kernel = jax.block_until_ready(
        freq_linear(x_small, w_blocked, b_blocked, modes1, force_pallas=True))
    ref_small = reference(x_small)
    assert out_small.shape == (T_small, modes1) and out_small.dtype == jnp.complex64
    assert jnp.allclose(out_small, ref_small, atol=1e-5, rtol=1e-5)
    assert jnp.allclose(out_small_kernel, ref_small, atol=1e-5, rtol=1e-5)

    # --- Case 2: multi-step grid with a partial last block (T not a multiple
    # of tile_t), exercising the pipelined Pallas path.
    T_big = 1031
    x_big = jax.random.normal(kx2, (T_big, in_channel), dtype=jnp.float32)
    out_big = jax.block_until_ready(
        freq_linear(x_big, w_blocked, b_blocked, modes1,
                    force_pallas=True, max_tile_t=512))
    ref_big = reference(x_big)
    assert out_big.shape == (T_big, modes1) and out_big.dtype == jnp.complex64
    assert jnp.allclose(out_big, ref_big, atol=1e-4, rtol=1e-4)

    print("KERNEL_OK")
</pallas_src>

<mosaic_0001>
module attributes {stable_mosaic.version = 11 : i64} {
  func.func @_freqlinear_kernel(%arg0: i32, %arg1: memref<8x32xf32, #tpu.memory_space<vmem>>, %arg2: memref<32x32xf32, #tpu.memory_space<vmem>>, %arg3: memref<1x32xf32, #tpu.memory_space<vmem>>, %arg4: memref<8x32xf32, #tpu.memory_space<vmem>>) attributes {dimension_semantics = [#tpu.dimension_semantics<parallel>], iteration_bounds = array<i64: 1>, scalar_prefetch = 0 : i64, scratch_operands = 0 : i64, tpu.core_type = #tpu.core_type<tc>, window_params = [{transform_indices = @transform_0, window_bounds = array<i64: 8, 32>}, {pipeline_mode = #tpu.pipeline_mode<synchronous>, transform_indices = @transform_1, window_bounds = array<i64: 32, 32>}, {pipeline_mode = #tpu.pipeline_mode<synchronous>, transform_indices = @transform_2, window_bounds = array<i64: 1, 32>}, {transform_indices = @transform_3, window_bounds = array<i64: 8, 32>}]} {
    %c0 = arith.constant 0 : index
    %c0_0 = arith.constant 0 : index
    %0 = vector.load %arg1[%c0, %c0_0] : memref<8x32xf32, #tpu.memory_space<vmem>>, vector<8x32xf32>
    %c0_1 = arith.constant 0 : index
    %c0_2 = arith.constant 0 : index
    %1 = vector.load %arg2[%c0_1, %c0_2] : memref<32x32xf32, #tpu.memory_space<vmem>>, vector<32x32xf32>
    %cst = arith.constant dense<0.000000e+00> : vector<8x32xf32>
    %2 = tpu.matmul %0, %1, %cst {dimension_numbers = #tpu.dot_dimension_numbers<[1], [0], [0], [1], [0, 0, 1, 1], [], []>} : vector<8x32xf32>, vector<32x32xf32>, vector<8x32xf32> -> vector<8x32xf32>
    %c0_3 = arith.constant 0 : index
    %c0_4 = arith.constant 0 : index
    %3 = vector.load %arg3[%c0_3, %c0_4] : memref<1x32xf32, #tpu.memory_space<vmem>>, vector<1x32xf32>
    %4 = vector.broadcast %3 : vector<1x32xf32> to vector<8x32xf32>
    %5 = arith.addf %2, %4 : vector<8x32xf32>
    %c0_5 = arith.constant 0 : index
    %c0_6 = arith.constant 0 : index
    %6 = vector.load %arg4[%c0_5, %c0_6] : memref<8x32xf32, #tpu.memory_space<vmem>>, vector<8x32xf32>
    tpu.vector_store %arg4[%c0_5, %c0_6], %5 {strides = array<i32>} : memref<8x32xf32, #tpu.memory_space<vmem>>, vector<8x32xf32>,
    return
  }
  func.func @transform_0(%arg0: i32) -> (i32, i32) {
    %c0_i32 = arith.constant 0 : i32
    %c0_i32_0 = arith.constant 0 : i32
    return %arg0, %c0_i32 : i32, i32
  }
  func.func @transform_1(%arg0: i32) -> (i32, i32) {
    %c0_i32 = arith.constant 0 : i32
    %c0_i32_0 = arith.constant 0 : i32
    %c0_i32_1 = arith.constant 0 : i32
    return %c0_i32, %c0_i32_0 : i32, i32
  }
  func.func @transform_2(%arg0: i32) -> (i32, i32) {
    %c0_i32 = arith.constant 0 : i32
    %c0_i32_0 = arith.constant 0 : i32
    %c0_i32_1 = arith.constant 0 : i32
    return %c0_i32, %c0_i32_0 : i32, i32
  }
  func.func @transform_3(%arg0: i32) -> (i32, i32) {
    %c0_i32 = arith.constant 0 : i32
    %c0_i32_0 = arith.constant 0 : i32
    return %arg0, %c0_i32 : i32, i32
  }
}

</mosaic_0001>

<llo_original>
// kernel: tpu_custom_call.1
$region0: #{tpu_custom_call.1}
  #allocation0 [shape = 'u32[]', space=smem, size = 0x4, offset = 0x4, fixed_abs, tag = 'smem constant byte address 0x4 - core index']
  #allocation1 [shape = 'u32[144,128]{1,0:T(1,128)}', space=vmem, size = 0x12000, scoped, tag = 'internal scratch']
  %s0 = inlined_call_operand.hbm [shape: f32[8,32], index: 0, kind: input, shape index: {}]
  %s1 = inlined_call_operand.hbm [shape: f32[32,32], index: 1, kind: input, shape index: {}]
  %s2 = inlined_call_operand.vmem [shape: f32[1,32], index: 2, kind: input, shape index: {}]
  %s3 = inlined_call_operand.hbm [shape: f32[8,32], index: 3, kind: output, shape index: {}]
  %s4 = sld [smem:[#allocation0]]
  $region30: #{tpu_custom_call.1} parent=0
    _
  %s6 = ssub.s32 1, %s4
  %s7 = scalar_select 0, %s6, %s4
  $region1: #{tpu_custom_call.1} parent=0
    #allocation2 [shape = 'u8[4096]{0}', space=vmem, size = 0x1000, scoped, tag = 'input window, operand 0, single buffered']
    #allocation3 [shape = 's32[1]{0}', space=sflag, size = 0x4, scoped, tag = 'scoped memory for tpu_custom_call.1']
    #allocation4 [shape = 's32[1]{0}', space=sflag, size = 0x4, scoped, tag = 'scoped memory for tpu_custom_call.1']
    #allocation5 [shape = 'u8[16384]{0}', space=vmem, size = 0x4000, scoped, tag = 'input window, operand 1, single buffered']
    #allocation6 [shape = 's32[1]{0}', space=sflag, size = 0x4, scoped, tag = 'scoped memory for tpu_custom_call.1']
    #allocation7 [shape = 'u8[4096]{0}', space=vmem, size = 0x1000, scoped, tag = 'output window, operand 0, single buffered']
    %8 = vsyncpa [#allocation3], 0
    %9 = vsyncpa [#allocation6], 0
    %10 = vsyncpa [#allocation4], 0
    // Predicated region
    $region2: #{tpu_custom_call.1} parent=1 // pred_check
      _
    $region3: #{tpu_custom_call.1} parent=1 // pred_check_branch
      %12 = sbr.rel (0) target = $region5
    $region4: #{tpu_custom_call.1} parent=1 // pred_region
      %s14 = ssub.s32 128, 128
      %15 = vsyncadd [#allocation3], %s14
      %s17 = sshll.u32 [#allocation2], 4
      %s18 = int_to_ptr.vmem [resolvable:$true] %s17
      %20 = dma.hbm_to_vmem [thread:$0]  %s0, 128, %s18, [#allocation3]
    $region5: #{tpu_custom_call.1} parent=1 // pred_fallthru
      _
    // Predicated region
    $region6: #{tpu_custom_call.1} parent=1 // pred_check
      _
    $region7: #{tpu_custom_call.1} parent=1 // pred_check_branch
      %22 = sbr.rel (0) target = $region9
    $region8: #{tpu_custom_call.1} parent=1 // pred_region
      %s24 = ssub.s32 512, 512
      %25 = vsyncadd [#allocation6], %s24
      %s26 = sshll.u32 [#allocation5], 4
      %s27 = int_to_ptr.vmem [resolvable:$true] %s26
      %32 = dma.hbm_to_vmem [thread:$0]  %s1, 512, %s27, [#allocation6], 128, 128, 8
    $region9: #{tpu_custom_call.1} parent=1 // pred_fallthru
      _
    // Predicated region
    $region10: #{tpu_custom_call.1} parent=1 // pred_check
      _
    $region11: #{tpu_custom_call.1} parent=1 // pred_check_branch
      %34 = sbr.rel (0) target = $region13
    $region12: #{tpu_custom_call.1} parent=1 // pred_region
      _
    $region13: #{tpu_custom_call.1} parent=1 // pred_fallthru
      _
    // Predicated region
    $region14: #{tpu_custom_call.1} parent=1 // pred_check
      _
    $region15: #{tpu_custom_call.1} parent=1 // pred_check_branch
      %36 = sbr.rel (0) target = $region17
    $region16: #{tpu_custom_call.1} parent=1 // pred_region
      %37 = dma.done [#allocation3], 128
    $region17: #{tpu_custom_call.1} parent=1 // pred_fallthru
      _
    // Predicated region
    $region18: #{tpu_custom_call.1} parent=1 // pred_check
      _
    $region19: #{tpu_custom_call.1} parent=1 // pred_check_branch
      %39 = sbr.rel (0) target = $region21
    $region20: #{tpu_custom_call.1} parent=1 // pred_region
      %40 = dma.done [#allocation6], 512
    $region21: #{tpu_custom_call.1} parent=1 // pred_fallthru
      _
    %v41 = vld [vmem:[#allocation2] sm:$0xff]
    %v42 = vld [vmem:[#allocation5] sm:$0xff]
    %v43 = vld [vmem:[#allocation5 + $0x8] sm:$0xff]
    %v44 = vld [vmem:[#allocation5 + $0x10] sm:$0xff]
    %v45 = vld [vmem:[#allocation5 + $0x18] sm:$0xff]
    %v46 = vld [vmem:[%s2] sm:$0x1]
    %v48 = vlaneseq
    %v49 = vshrl.u32 %v48, 7
    %v50 = vsub.s32 0, %v49
    %v51 = vrot.slane %v46, %v50
    %vm53 = vcmask 261120
    %v55 = vsel %vm53, %v41, 0
    %57 = vmatprep.subr.mxu0 0.0
    %58 = vmatpush1.msra.mxu0 %v42
    %59 = vmatprep.subr.mxu0 0.0
    %60 = vmatpush1.msra.mxu0 %v43
    %61 = vmatprep.subr.mxu0 0.0
    %62 = vmatpush1.msra.mxu0 %v44
    %63 = vmatprep.subr.mxu0 0.0
    %64 = vmatpush1.msra.mxu0 %v45
    %65 = vmatprep.subr.mxu0 0.0
    %66 = vmatpush1.msra.mxu0 0.0
    %67 = vmatprep.subr.mxu0 0.0
    %68 = vmatpush1.msra.mxu0 0.0
    %69 = vmatprep.subr.mxu0 0.0
    %70 = vmatpush1.msra.mxu0 0.0
    %71 = vmatprep.subr.mxu0 0.0
    %72 = vmatpush1.msra.mxu0 0.0
    %73 = vmatprep.subr.mxu0 0.0
    %74 = vmatpush1.msra.mxu0 0.0
    %75 = vmatprep.subr.mxu0 0.0
    %76 = vmatpush1.msra.mxu0 0.0
    %77 = vmatprep.subr.mxu0 0.0
    %78 = vmatpush1.msra.mxu0 0.0
    %79 = vmatprep.subr.mxu0 0.0
    %80 = vmatpush1.msra.mxu0 0.0
    %81 = vmatprep.subr.mxu0 0.0
    %82 = vmatpush1.msra.mxu0 0.0
    %83 = vmatprep.subr.mxu0 0.0
    %84 = vmatpush1.msra.mxu0 0.0
    %85 = vmatprep.subr.mxu0 0.0
    %86 = vmatpush1.msra.mxu0 0.0
    %87 = vmatprep.subr.mxu0 0.0
    %88 = vmatpush1.msra.mxu0 0.0
    %89 = vmatprep.subr.mxu0 0.0
    %90 = vmatpush1.msra.mxu0 0.0
    %91 = vmatprep.subr.mxu0 0.0
    %92 = vmatpush1.msra.mxu0 0.0
    %93 = vmatprep.subr.mxu0 0.0
    %94 = vmatpush1.msra.mxu0 0.0
    %95 = vmatprep.subr.mxu0 0.0
    %96 = vmatpush1.msra.mxu0 0.0
    %97 = vmatprep.subr.mxu0 0.0
    %98 = vmatpush1.msra.mxu0 0.0
    %99 = vmatprep.subr.mxu0 0.0
    %100 = vmatpush1.msra.mxu0 0.0
    %101 = vmatprep.subr.mxu0 0.0
    %102 = vmatpush1.msra.mxu0 0.0
    %103 = vmatprep.subr.mxu0 0.0
    %104 = vmatpush1.msra.mxu0 0.0
    %105 = vmatprep.subr.mxu0 0.0
    %106 = vmatpush1.msra.mxu0 0.0
    %107 = vmatprep.subr.mxu0 0.0
    %108 = vmatpush1.msra.mxu0 0.0
    %109 = vmatprep.subr.mxu0 0.0
    %110 = vmatpush1.msra.mxu0 0.0
    %111 = vmatprep.subr.mxu0 0.0
    %112 = vmatpush1.msra.mxu0 0.0
    %113 = vmatprep.subr.mxu0 0.0
    %114 = vmatpush1.msra.mxu0 0.0
    %115 = vmatprep.subr.mxu0 0.0
    %116 = vmatpush1.msra.mxu0 0.0
    %117 = vmatprep.subr.mxu0 0.0
    %118 = vmatpush1.msra.mxu0 0.0
    %119 = vmatprep.subr.mxu0 0.0
    %120 = vmatpush1.msra.mxu0 0.0
    %121 = vmatprep.mubr.f32.mxu0 0.0
    %122 = vmatmul.mubr.f32.gmra.mrb[0].mxu0 %v55
    %v123 = vpop.f32.mrb[0].mxu0
    %v124 = vadd.f32 %v51, %v123
    %v125 = vpop.f32.mrb[0].mxu0
    %126 = vdwg.mxu0
    %127 = vst.msk [vmem:[#allocation7] sm:$0xff] %vm53, %v124
    // Predicated region
    $region22: #{tpu_custom_call.1} parent=1 // pred_check
      _
    $region23: #{tpu_custom_call.1} parent=1 // pred_check_branch
      %129 = sbr.rel (0) target = $region25
    $region24: #{tpu_custom_call.1} parent=1 // pred_region
      %s131 = ssub.s32 128, 128
      %132 = vsyncadd [#allocation4], %s131
      %s134 = sshll.u32 [#allocation7], 4
      %s135 = int_to_ptr.vmem [resolvable:$true] %s134
      %137 = dma.vmem_to_hbm [thread:$0]  %s135, 128, %s3, [#allocation4]
    $region25: #{tpu_custom_call.1} parent=1 // pred_fallthru
      _
    // Predicated region
    $region26: #{tpu_custom_call.1} parent=1 // pred_check
      _
    $region27: #{tpu_custom_call.1} parent=1 // pred_check_branch
      %139 = sbr.rel (0) target = $region29
    $region28: #{tpu_custom_call.1} parent=1 // pred_region
      %140 = dma.done [#allocation4], 128
    $region29: #{tpu_custom_call.1} parent=1 // pred_fallthru
      _
    %141 = vsyncpa [#allocation3], 1
    %142 = vsyncpa [#allocation6], 1
    %143 = vsyncpa [#allocation4], 1

</llo_original>
